<compile_context>
chip_gen: v5e
topology: v5e:2x2
jax: 0.10.0
libtpu: 0.0.40
codegen_flags: <defaults>
</compile_context>

<pallas_src>
import functools

import jax
import jax.numpy as jnp
from jax.experimental import pallas as pl
from jax.experimental.pallas import tpu as pltpu

EPS = 1e-5


def _cdiv(a, b):
    return -(-a // b)


def _round_up(x, m):
    return _cdiv(x, m) * m


def _chip_vmem_bytes():
    """Physical VMEM of the local chip (64 MiB fallback = v7x-conservative)."""
    try:
        return int(pltpu.get_tpu_info().vmem_capacity_bytes)
    except Exception:
        return 64 * 1024 * 1024


def _prenorm_proj_kernel(apply_gelu, x_ref, w_ref, b_ref, o_ref):
    """One (TM, D) row tile:  o = [GELU]( LN_no_affine(x) @ W + b ).

    LN statistics are computed in f32; the centered/scaled rows are cast to
    w.dtype so the MXU runs at the weight precision (bf16 native rate) with
    f32 accumulation. gamma/beta were pre-folded into W/b by the wrapper."""
    x = x_ref[...].astype(jnp.float32)
    mean = jnp.mean(x, axis=-1, keepdims=True)
    xc = x - mean
    var = jnp.mean(xc * xc, axis=-1, keepdims=True)
    inv = jax.lax.rsqrt(var + EPS)
    y = (xc * inv).astype(w_ref.dtype)

    acc = jnp.dot(y, w_ref[...], preferred_element_type=jnp.float32)
    acc = acc + b_ref[...]                       # (1, D_out) f32, broadcast
    if apply_gelu:
        # tanh-approx GELU (PyTorch nn.GELU default is erf-exact; |diff| <~1e-3).
        acc = jax.nn.gelu(acc, approximate=True)
    o_ref[...] = acc.astype(o_ref.dtype)


def prenorm_projection(x, gamma, beta, w, b=None, *, apply_gelu=False,
                       out_dtype=None):
    """Fused y = [GELU]( Linear( LayerNorm(x) ) ) — the ViT PreNorm hot path.

    x: (B, S, D).   gamma/beta: (D,) LayerNorm affine (f32 recommended).
    w: (D, D_out) stored as (in_dim, out_dim) — transposed vs nn.Linear.weight.
    b: (D_out,) or None (e.g. to_qkv has bias=False).
    Returns (B, S, D_out) in x.dtype (or out_dtype)."""
    B, S, D = x.shape
    D_in, D_out = w.shape
    assert D_in == D, "w must be (in_dim, out_dim); transpose the PyTorch weight"
    assert gamma.shape == (D,) and beta.shape == (D,)
    if out_dtype is None:
        out_dtype = x.dtype
    N = B * S

    # --- fold the LN affine into the projection (removes 2 full VALU passes) ---
    w_f32 = w.astype(jnp.float32)
    w_eff = (gamma.astype(jnp.float32)[:, None] * w_f32).astype(w.dtype)
    b_eff = jnp.dot(beta.astype(jnp.float32), w_f32,
                    preferred_element_type=jnp.float32)
    if b is not None:
        b_eff = b_eff + b.astype(jnp.float32)
    b_eff = b_eff.reshape(1, D_out).astype(jnp.float32)

    # --- no feature-dim padding: blocks span the full D / D_out, which is
    # always legal ("divisible by (8,128) OR equal to the full array dim").
    x2 = x.reshape(N, D)

    # --- per-generation tiling ---
    itemsize = x.dtype.itemsize
    out_itemsize = jnp.dtype(out_dtype).itemsize
    row_align = 8 if itemsize >= 4 else 16            # sublane packing
    vmem_cap = _chip_vmem_bytes()
    if vmem_cap >= 96 * 1024 * 1024:                   # v5e / v6e (128 MiB VMEM)
        tm_max, vmem_ceiling = 2048, 100 * 1024 * 1024
    else:                                              # v7x (64 MiB VMEM)
        tm_max, vmem_ceiling = 512, 48 * 1024 * 1024

    if N <= 2 * row_align:
        TM = N                                         # one tiny block == full dim
    else:
        # >= 2 grid steps so the "parallel" axis feeds both v7x TensorCores;
        # a balanced split minimizes wasted rows in the ragged last block.
        # (When clamped by small N, TM is row_align-granular rather than
        # 256-aligned; the MXU underfill is negligible at these sizes.)
        n_tiles = max(2, _cdiv(N, tm_max))
        TM = _round_up(_cdiv(N, n_tiles), row_align)

    def _vmem_need(tm):
        return (2 * tm * D * itemsize                  # double-buffered x tiles
                + 2 * tm * D_out * out_itemsize        # double-buffered out tiles
                + 2 * D * D_out * w_eff.dtype.itemsize # resident weights
                + 2 * D_out * 4                        # bias
                + 3 * tm * D * 4 + tm * D_out * 4)     # f32 temporaries headroom

    while TM > 2 * row_align and (5 * _vmem_need(TM)) // 4 > vmem_ceiling:
        TM = _round_up(_cdiv(TM, 2), row_align)

    grid0 = _cdiv(N, TM)
    vmem_limit = int(min(vmem_ceiling,
                         max(32 * 1024 * 1024, (5 * _vmem_need(TM)) // 4)))

    cost = pl.CostEstimate(
        flops=int(2 * N * D * D_out + 8 * N * D
                  + (30 * N * D_out if apply_gelu else 0)),
        transcendentals=int(N + (N * D_out if apply_gelu else 0)),
        bytes_accessed=int(N * D * itemsize + N * D_out * out_itemsize
                           + D * D_out * w_eff.dtype.itemsize + D_out * 4),
    )

    out = pl.pallas_call(
        functools.partial(_prenorm_proj_kernel, apply_gelu),
        out_shape=jax.ShapeDtypeStruct((N, D_out), out_dtype),
        grid_spec=pltpu.PrefetchScalarGridSpec(
            num_scalar_prefetch=0,
            grid=(grid0,),
            in_specs=[
                pl.BlockSpec((TM, D), lambda i: (i, 0)),     # x: streamed rows
                pl.BlockSpec((D, D_out), lambda i: (0, 0)),  # W: VMEM-resident
                pl.BlockSpec((1, D_out), lambda i: (0, 0)),  # b: VMEM-resident
            ],
            out_specs=pl.BlockSpec((TM, D_out), lambda i: (i, 0)),
        ),
        compiler_params=pltpu.CompilerParams(
            dimension_semantics=("parallel",),
            vmem_limit_bytes=vmem_limit,
        ),
        cost_estimate=cost,
    )(x2, w_eff, b_eff)

    return out.reshape(B, S, D_out)


# ----------------------------- pure-JAX references -----------------------------

def _layernorm_ref(x, gamma, beta):
    xf = x.astype(jnp.float32)
    mean = jnp.mean(xf, axis=-1, keepdims=True)
    xc = xf - mean
    var = jnp.mean(xc * xc, axis=-1, keepdims=True)
    return (xc * jax.lax.rsqrt(var + EPS) * gamma.astype(jnp.float32)
            + beta.astype(jnp.float32))


def prenorm_projection_ref(x, gamma, beta, w, b=None, *, apply_gelu=False,
                           out_dtype=None):
    if out_dtype is None:
        out_dtype = x.dtype
    y = _layernorm_ref(x, gamma, beta).astype(w.dtype)
    out = jnp.dot(y, w, preferred_element_type=jnp.float32)
    if b is not None:
        out = out + b.astype(jnp.float32)
    if apply_gelu:
        out = jax.nn.gelu(out, approximate=True)
    return out.astype(out_dtype)


def t_block_forward(x, p, heads, dim_head, use_kernel=True):
    """One ViT T_block: x = PreNorm(Attention)(x)+x ; x = PreNorm(FF)(x)+x.
    Only the two fused LN + input-projection hot paths run in the Pallas
    kernel; the rest (softmax attention, to_out, fc2, residuals) is XLA."""
    B, S, D = x.shape
    inner = heads * dim_head
    proj = prenorm_projection if use_kernel else prenorm_projection_ref

    # --- PreNorm(Attention): fused LN + to_qkv (D -> 3*inner, bias=False) ---
    qkv = proj(x, p["ln1_g"], p["ln1_b"], p["w_qkv"], None)
    q, k, v = jnp.split(qkv.astype(jnp.float32), 3, axis=-1)

    def split_heads(t):                      # 'b n (h d) -> b h n d'
        return t.reshape(B, S, heads, dim_head).transpose(0, 2, 1, 3)

    q, k, v = map(split_heads, (q, k, v))
    dots = jnp.einsum("bhqd,bhkd->bhqk", q, k) * (dim_head ** -0.5)
    attn = jax.nn.softmax(dots, axis=-1)     # dropout == identity at inference
    o = jnp.einsum("bhqk,bhkd->bhqd", attn, v)
    o = o.transpose(0, 2, 1, 3).reshape(B, S, inner)   # 'b h n d -> b n (h d)'
    o = (jnp.dot(o.astype(p["w_out"].dtype), p["w_out"],
                 preferred_element_type=jnp.float32)
         + p["b_out"].astype(jnp.float32))
    x = o.astype(x.dtype) + x                # residual

    # --- PreNorm(FeedForward): fused LN + fc1 + GELU (D -> mlp_dim) ---
    h = proj(x, p["ln2_g"], p["ln2_b"], p["w_fc1"], p["b_fc1"], apply_gelu=True)
    h = (jnp.dot(h.astype(p["w_fc2"].dtype), p["w_fc2"],
                 preferred_element_type=jnp.float32)
         + p["b_fc2"].astype(jnp.float32))
    return h.astype(x.dtype) + x             # residual


if __name__ == "__main__":
    # Small shapes consistent with the module: batch=2, tokens=8, dim=32,
    # heads=2, dim_head=16 (inner_dim=32), mlp_dim=64.
    B, S, D = 2, 8, 32
    heads, dim_head, mlp_dim = 2, 16, 64
    inner = heads * dim_head

    key = jax.random.PRNGKey(0)
    ks = jax.random.split(key, 12)

    def lin(k, fan_in, shape):
        return jax.random.normal(k, shape, dtype=jnp.float32) / jnp.sqrt(fan_in)

    x = jax.random.normal(ks[0], (B, S, D), dtype=jnp.float32)
    params = {
        "ln1_g": 1.0 + 0.1 * jax.random.normal(ks[1], (D,), jnp.float32),
        "ln1_b": 0.05 * jax.random.normal(ks[2], (D,), jnp.float32),
        "w_qkv": lin(ks[3], D, (D, 3 * inner)),           # to_qkv (bias=False)
        "w_out": lin(ks[4], inner, (inner, D)),           # to_out Linear
        "b_out": 0.01 * jax.random.normal(ks[5], (D,), jnp.float32),
        "ln2_g": 1.0 + 0.1 * jax.random.normal(ks[6], (D,), jnp.float32),
        "ln2_b": 0.05 * jax.random.normal(ks[7], (D,), jnp.float32),
        "w_fc1": lin(ks[8], D, (D, mlp_dim)),             # FeedForward fc1
        "b_fc1": 0.01 * jax.random.normal(ks[9], (mlp_dim,), jnp.float32),
        "w_fc2": lin(ks[10], mlp_dim, (mlp_dim, D)),      # FeedForward fc2
        "b_fc2": 0.01 * jax.random.normal(ks[11], (D,), jnp.float32),
    }

    # 1) Full T_block forward (f32): kernel-backed vs pure-JAX reference.
    out = jax.block_until_ready(
        t_block_forward(x, params, heads, dim_head, use_kernel=True))
    ref = jax.block_until_ready(
        t_block_forward(x, params, heads, dim_head, use_kernel=False))
    assert out.shape == (B, S, D) and out.dtype == x.dtype
    err = float(jnp.max(jnp.abs(out - ref)))
    assert err < 3e-2, f"T_block max abs err = {err}"

    # 2) bf16 path (native MXU rate): fused LN + qkv projection only.
    xb = x.astype(jnp.bfloat16)
    wb = params["w_qkv"].astype(jnp.bfloat16)
    ob = jax.block_until_ready(
        prenorm_projection(xb, params["ln1_g"], params["ln1_b"], wb, None))
    rb = prenorm_projection_ref(xb, params["ln1_g"], params["ln1_b"], wb, None)
    assert ob.shape == (B, S, 3 * inner) and ob.dtype == jnp.bfloat16
    ok = jnp.allclose(ob.astype(jnp.float32), rb.astype(jnp.float32),
                      atol=3e-2, rtol=3e-2)
    errb = float(jnp.max(jnp.abs(ob.astype(jnp.float32) - rb.astype(jnp.float32))))
    assert ok, f"bf16 qkv max abs err = {errb}"

    print("KERNEL_OK")
</pallas_src>

<mosaic_0001>
module attributes {stable_mosaic.version = 11 : i64} {
  func.func @_prenorm_proj_kernel(%arg0: i32, %arg1: memref<16x32xf32, #tpu.memory_space<vmem>>, %arg2: memref<32x96xf32, #tpu.memory_space<vmem>>, %arg3: memref<1x96xf32, #tpu.memory_space<vmem>>, %arg4: memref<16x96xf32, #tpu.memory_space<vmem>>) attributes {dimension_semantics = [#tpu.dimension_semantics<parallel>], iteration_bounds = array<i64: 1>, scalar_prefetch = 0 : i64, scratch_operands = 0 : i64, tpu.core_type = #tpu.core_type<tc>, window_params = [{transform_indices = @transform_0, window_bounds = array<i64: 16, 32>}, {pipeline_mode = #tpu.pipeline_mode<synchronous>, transform_indices = @transform_1, window_bounds = array<i64: 32, 96>}, {pipeline_mode = #tpu.pipeline_mode<synchronous>, transform_indices = @transform_2, window_bounds = array<i64: 1, 96>}, {transform_indices = @transform_3, window_bounds = array<i64: 16, 96>}]} {
    %c0 = arith.constant 0 : index
    %c0_0 = arith.constant 0 : index
    %0 = vector.load %arg1[%c0, %c0_0] : memref<16x32xf32, #tpu.memory_space<vmem>>, vector<16x32xf32>
    %cst = arith.constant dense<0.000000e+00> : vector<16xf32>
    %1 = vector.multi_reduction <add>, %0, %cst [1] : vector<16x32xf32> to vector<16xf32>
    %2 = vector.shape_cast %1 : vector<16xf32> to vector<16x1xf32>
    %cst_1 = arith.constant 3.200000e+01 : f32
    %3 = vector.broadcast %cst_1 : f32 to vector<16x1xf32>
    %4 = arith.divf %2, %3 : vector<16x1xf32>
    %5 = vector.broadcast %4 : vector<16x1xf32> to vector<16x32xf32>
    %6 = arith.subf %0, %5 : vector<16x32xf32>
    %7 = arith.mulf %6, %6 : vector<16x32xf32>
    %cst_2 = arith.constant dense<0.000000e+00> : vector<16xf32>
    %8 = vector.multi_reduction <add>, %7, %cst_2 [1] : vector<16x32xf32> to vector<16xf32>
    %9 = vector.shape_cast %8 : vector<16xf32> to vector<16x1xf32>
    %cst_3 = arith.constant 3.200000e+01 : f32
    %10 = vector.broadcast %cst_3 : f32 to vector<16x1xf32>
    %11 = arith.divf %9, %10 : vector<16x1xf32>
    %cst_4 = arith.constant 9.99999974E-6 : f32
    %12 = vector.broadcast %cst_4 : f32 to vector<16x1xf32>
    %13 = arith.addf %11, %12 : vector<16x1xf32>
    %14 = math.rsqrt %13 : vector<16x1xf32>
    %15 = vector.broadcast %14 : vector<16x1xf32> to vector<16x32xf32>
    %16 = arith.mulf %6, %15 : vector<16x32xf32>
    %c0_5 = arith.constant 0 : index
    %c0_6 = arith.constant 0 : index
    %17 = vector.load %arg2[%c0_5, %c0_6] : memref<32x96xf32, #tpu.memory_space<vmem>>, vector<32x96xf32>
    %cst_7 = arith.constant dense<0.000000e+00> : vector<16x96xf32>
    %18 = tpu.matmul %16, %17, %cst_7 {dimension_numbers = #tpu.dot_dimension_numbers<[1], [0], [0], [1], [0, 0, 1, 1], [], []>} : vector<16x32xf32>, vector<32x96xf32>, vector<16x96xf32> -> vector<16x96xf32>
    %c0_8 = arith.constant 0 : index
    %c0_9 = arith.constant 0 : index
    %19 = vector.load %arg3[%c0_8, %c0_9] : memref<1x96xf32, #tpu.memory_space<vmem>>, vector<1x96xf32>
    %20 = vector.broadcast %19 : vector<1x96xf32> to vector<16x96xf32>
    %21 = arith.addf %18, %20 : vector<16x96xf32>
    %c0_10 = arith.constant 0 : index
    %c0_11 = arith.constant 0 : index
    %22 = vector.load %arg4[%c0_10, %c0_11] : memref<16x96xf32, #tpu.memory_space<vmem>>, vector<16x96xf32>
    tpu.vector_store %arg4[%c0_10, %c0_11], %21 {strides = array<i32>} : memref<16x96xf32, #tpu.memory_space<vmem>>, vector<16x96xf32>,
    return
  }
  func.func @transform_0(%arg0: i32) -> (i32, i32) {
    %c0_i32 = arith.constant 0 : i32
    %c0_i32_0 = arith.constant 0 : i32
    return %arg0, %c0_i32 : i32, i32
  }
  func.func @transform_1(%arg0: i32) -> (i32, i32) {
    %c0_i32 = arith.constant 0 : i32
    %c0_i32_0 = arith.constant 0 : i32
    %c0_i32_1 = arith.constant 0 : i32
    return %c0_i32, %c0_i32_0 : i32, i32
  }
  func.func @transform_2(%arg0: i32) -> (i32, i32) {
    %c0_i32 = arith.constant 0 : i32
    %c0_i32_0 = arith.constant 0 : i32
    %c0_i32_1 = arith.constant 0 : i32
    return %c0_i32, %c0_i32_0 : i32, i32
  }
  func.func @transform_3(%arg0: i32) -> (i32, i32) {
    %c0_i32 = arith.constant 0 : i32
    %c0_i32_0 = arith.constant 0 : i32
    return %arg0, %c0_i32 : i32, i32
  }
}

</mosaic_0001>

<llo_original>
// kernel: tpu_custom_call.1
$region0: #{tpu_custom_call.1}
  #allocation0 [shape = 'u32[]', space=smem, size = 0x4, offset = 0x4, fixed_abs, tag = 'smem constant byte address 0x4 - core index']
  #allocation1 [shape = 'u32[72,128]{1,0:T(1,128)}', space=vmem, size = 0x9000, scoped, tag = 'internal scratch']
  %s0 = inlined_call_operand.hbm [shape: f32[16,32], index: 0, kind: input, shape index: {}]
  %s1 = inlined_call_operand.hbm [shape: f32[32,96], index: 1, kind: input, shape index: {}]
  %s2 = inlined_call_operand.vmem [shape: f32[1,96], index: 2, kind: input, shape index: {}]
  %s3 = inlined_call_operand.hbm [shape: f32[16,96], index: 3, kind: output, shape index: {}]
  %s4 = sld [smem:[#allocation0]]
  $region30: #{tpu_custom_call.1} parent=0
    _
  %s6 = ssub.s32 1, %s4
  %s7 = scalar_select 0, %s6, %s4
  $region1: #{tpu_custom_call.1} parent=0
    #allocation2 [shape = 'u8[8192]{0}', space=vmem, size = 0x2000, scoped, tag = 'input window, operand 0, single buffered']
    #allocation3 [shape = 's32[1]{0}', space=sflag, size = 0x4, scoped, tag = 'scoped memory for tpu_custom_call.1']
    #allocation4 [shape = 's32[1]{0}', space=sflag, size = 0x4, scoped, tag = 'scoped memory for tpu_custom_call.1']
    #allocation5 [shape = 'u8[16384]{0}', space=vmem, size = 0x4000, scoped, tag = 'input window, operand 1, single buffered']
    #allocation6 [shape = 's32[1]{0}', space=sflag, size = 0x4, scoped, tag = 'scoped memory for tpu_custom_call.1']
    #allocation7 [shape = 'u8[8192]{0}', space=vmem, size = 0x2000, scoped, tag = 'output window, operand 0, single buffered']
    %8 = vsyncpa [#allocation3], 0
    %9 = vsyncpa [#allocation6], 0
    %10 = vsyncpa [#allocation4], 0
    // Predicated region
    $region2: #{tpu_custom_call.1} parent=1 // pred_check
      _
    $region3: #{tpu_custom_call.1} parent=1 // pred_check_branch
      %12 = sbr.rel (0) target = $region5
    $region4: #{tpu_custom_call.1} parent=1 // pred_region
      %14 = vsyncadd [#allocation3], 0
      %s15 = sshll.u32 %s0, 4
      %s16 = int_to_ptr.hbm [resolvable:$true] %s15
      %s17 = sshll.u32 [#allocation2], 4
      %s18 = int_to_ptr.vmem [resolvable:$true] %s17
      %23 = dma.hbm_to_vmem [thread:$0]  %s16, 256, %s18, [#allocation3], 128, 128, 8
    $region5: #{tpu_custom_call.1} parent=1 // pred_fallthru
      _
    // Predicated region
    $region6: #{tpu_custom_call.1} parent=1 // pred_check
      _
    $region7: #{tpu_custom_call.1} parent=1 // pred_check_branch
      %25 = sbr.rel (0) target = $region9
    $region8: #{tpu_custom_call.1} parent=1 // pred_region
      %27 = vsyncadd [#allocation6], 0
      %s28 = sshll.u32 %s1, 4
      %s29 = int_to_ptr.hbm [resolvable:$true] %s28
      %s30 = sshll.u32 [#allocation5], 4
      %s31 = int_to_ptr.vmem [resolvable:$true] %s30
      %36 = dma.hbm_to_vmem [thread:$0]  %s29, 512, %s31, [#allocation6], 128, 128, 8
    $region9: #{tpu_custom_call.1} parent=1 // pred_fallthru
      _
    // Predicated region
    $region10: #{tpu_custom_call.1} parent=1 // pred_check
      _
    $region11: #{tpu_custom_call.1} parent=1 // pred_check_branch
      %38 = sbr.rel (0) target = $region13
    $region12: #{tpu_custom_call.1} parent=1 // pred_region
      _
    $region13: #{tpu_custom_call.1} parent=1 // pred_fallthru
      _
    // Predicated region
    $region14: #{tpu_custom_call.1} parent=1 // pred_check
      _
    $region15: #{tpu_custom_call.1} parent=1 // pred_check_branch
      %40 = sbr.rel (0) target = $region17
    $region16: #{tpu_custom_call.1} parent=1 // pred_region
      %42 = dma.done [#allocation3], 256
    $region17: #{tpu_custom_call.1} parent=1 // pred_fallthru
      _
    // Predicated region
    $region18: #{tpu_custom_call.1} parent=1 // pred_check
      _
    $region19: #{tpu_custom_call.1} parent=1 // pred_check_branch
      %44 = sbr.rel (0) target = $region21
    $region20: #{tpu_custom_call.1} parent=1 // pred_region
      %46 = dma.done [#allocation6], 512
    $region21: #{tpu_custom_call.1} parent=1 // pred_fallthru
      _
    %v47 = vld [vmem:[#allocation2] sm:$0xff]
    %v48 = vld [vmem:[#allocation2 + $0x8] sm:$0xff]
    %vm49 = vcmask 261120
    %v50 = vsel %vm49, %v47, 0.0
    %51 = vadd.xlane.f32.xlu0 %v50
    %v52 = vpop.xlane.xlu0 %51
    %v53 = vsel %vm49, %v48, 0.0
    %54 = vadd.xlane.f32.xlu0 %v53
    %v55 = vpop.xlane.xlu0 %54
    %v56 = vrcp.pop 32.0
    %v57 = vmul.f32 32.0, %v56
    %v58 = vsub.f32 1.0, %v57
    %v59 = vmul.f32 %v56, %v58
    %v60 = vadd.f32 %v56, %v59
    %vm61 = vweird.f32 %v56
    %v62 = vsel %vm61, %v56, %v60
    %v63 = vmul.f32 %v52, %v62
    %v64 = vmul.f32 %v55, %v62
    %v65 = vsub.f32 %v47, %v63
    %v66 = vsub.f32 %v48, %v64
    %v67 = vmul.f32 %v65, %v65
    %v68 = vmul.f32 %v66, %v66
    %v69 = vsel %vm49, %v67, 0.0
    %70 = vadd.xlane.f32.xlu0 %v69
    %v71 = vpop.xlane.xlu0 %70
    %v72 = vsel %vm49, %v68, 0.0
    %73 = vadd.xlane.f32.xlu0 %v72
    %v74 = vpop.xlane.xlu0 %73
    %v75 = vmul.f32 %v71, %v62
    %v76 = vmul.f32 %v74, %v62
    %v77 = vadd.f32 %v75, 1e-05
    %v78 = vadd.f32 %v76, 1e-05
    %v79 = vrsqrt.pop %v77
    %v80 = vmul.f32 %v79, %v77
    %v81 = vmul.f32 %v80, %v79
    %v82 = vmul.f32 0.5, %v81
    %v83 = vsub.f32 1.5, %v82
    %v84 = vmul.f32 %v79, %v83
    %vm85 = vweird.f32 %v77
    %vm86 = vweird.f32 %v79
    %vm87 = vmor %vm85, %vm86
    %v88 = vsel %vm87, %v79, %v84
    %v89 = vrsqrt.pop %v78
    %v90 = vmul.f32 %v89, %v78
    %v91 = vmul.f32 %v90, %v89
    %v92 = vmul.f32 0.5, %v91
    %v93 = vsub.f32 1.5, %v92
    %v94 = vmul.f32 %v89, %v93
    %vm95 = vweird.f32 %v78
    %vm96 = vweird.f32 %v89
    %vm97 = vmor %vm95, %vm96
    %v98 = vsel %vm97, %v89, %v94
    %v99 = vmul.f32 %v65, %v88
    %v100 = vmul.f32 %v66, %v98
    %v101 = vld [vmem:[#allocation5] sm:$0xff]
    %v102 = vld [vmem:[#allocation5 + $0x8] sm:$0xff]
    %v103 = vld [vmem:[#allocation5 + $0x10] sm:$0xff]
    %v104 = vld [vmem:[#allocation5 + $0x18] sm:$0xff]
    %v105 = vld [vmem:[%s2] sm:$0x1]
    %v107 = vperm.slane %v105, 0
    %v110 = vsel %vm49, %v99, 0
    %v113 = vsel %vm49, %v100, 0
    %115 = vmatpush.msra.mxu0 0.0
    %116 = vmatpush.msra.mxu0 0.0
    %117 = vmatpush.msra.mxu0 0.0
    %118 = vmatpush.msra.mxu0 0.0
    %119 = vmatpush.msra.mxu0 0.0
    %120 = vmatpush.msra.mxu0 0.0
    %121 = vmatpush.msra.mxu0 0.0
    %122 = vmatpush.msra.mxu0 0.0
    %123 = vmatpush.msra.mxu0 0.0
    %124 = vmatpush.msra.mxu0 0.0
    %125 = vmatpush.msra.mxu0 0.0
    %126 = vmatpush.msra.mxu0 0.0
    %127 = vmatpush.msra.mxu0 %v104
    %128 = vmatpush.msra.mxu0 %v103
    %129 = vmatpush.msra.mxu0 %v102
    %130 = vmatpush.msra.mxu0 %v101
    %131 = vmatmul.f32.gmra.mxu0 %v110
    %v132 = vpop.f32.mrf.mxu0
    %v133 = vadd.f32 %v107, %v132
    %134 = vmatmul.f32.gmra.mxu0 %v113
    %v135 = vpop.f32.mrf.mxu0
    %v136 = vadd.f32 %v107, %v135
    %137 = vdwg.mxu0
    %vm138 = vcmask 785408
    %139 = vst.msk [vmem:[#allocation7] sm:$0xff] %vm138, %v133
    %140 = vst.msk [vmem:[#allocation7 + $0x8] sm:$0xff] %vm138, %v136
    // Predicated region
    $region22: #{tpu_custom_call.1} parent=1 // pred_check
      _
    $region23: #{tpu_custom_call.1} parent=1 // pred_check_branch
      %142 = sbr.rel (0) target = $region25
    $region24: #{tpu_custom_call.1} parent=1 // pred_region
      %144 = vsyncadd [#allocation4], 0
      %s145 = sshll.u32 [#allocation7], 4
      %s146 = int_to_ptr.vmem [resolvable:$true] %s145
      %s147 = sshll.u32 %s3, 4
      %s148 = int_to_ptr.hbm [resolvable:$true] %s147
      %153 = dma.vmem_to_hbm [thread:$0]  %s146, 256, %s148, [#allocation4], 128, 128, 8
    $region25: #{tpu_custom_call.1} parent=1 // pred_fallthru
      _
    // Predicated region
    $region26: #{tpu_custom_call.1} parent=1 // pred_check
      _
    $region27: #{tpu_custom_call.1} parent=1 // pred_check_branch
      %155 = sbr.rel (0) target = $region29
    $region28: #{tpu_custom_call.1} parent=1 // pred_region
      %157 = dma.done [#allocation4], 256
    $region29: #{tpu_custom_call.1} parent=1 // pred_fallthru
      _
    %158 = vsyncpa [#allocation3], 1
    %159 = vsyncpa [#allocation6], 1
    %160 = vsyncpa [#allocation4], 1

</llo_original>
